<compile_context>
chip_gen: v5e
topology: v5e:2x2
jax: 0.10.0
libtpu: 0.0.40
codegen_flags: <defaults>
</compile_context>

<pallas_src>
import functools

import jax
import jax.numpy as jnp
from jax.experimental import pallas as pl
from jax.experimental.pallas import tpu as pltpu


def _round_up(x, m):
    return (x + m - 1) // m * m


def _mlp_fused_kernel(*refs, num_layers, negative_slope, with_final_activation):
    """Fused N-layer complex MLP on packed [real | imag] lanes.

    refs = (x_ref, w0_ref, b0_ref, w1_ref, b1_ref, ..., out_ref)

    Each layer is a single MXU matmul on the packed complex weight block,
    a broadcast bias add and (conditionally) a per-component LeakyReLU
    (acts element-wise, so it is correct on the packed real/imag layout).
    The intermediate activation `h` stays entirely on-chip.
    """
    x_ref = refs[0]
    o_ref = refs[-1]
    wb = refs[1:-1]

    h = x_ref[...]
    for i in range(num_layers):
        w = wb[2 * i][...]
        b = wb[2 * i + 1][...]
        y = jnp.dot(h, w, preferred_element_type=jnp.float32) + b
        if i < num_layers - 1 or with_final_activation:
            # complex LeakyReLU == LeakyReLU applied independently to real/imag,
            # which is exactly element-wise on the packed layout.
            y = jnp.where(y >= 0, y, negative_slope * y)
        h = y
    o_ref[...] = h


def _pack_params(params):
    """Pack (w_r, w_i, b_r, b_i) per layer into lane-padded complex block form."""
    packed = []
    for (w_r, w_i, b_r, b_i) in params:
        c_in, c_out = w_r.shape
        cpi = _round_up(c_in, 128)
        cpo = _round_up(c_out, 128)
        wp = jnp.zeros((2 * cpi, 2 * cpo), jnp.float32)
        wp = wp.at[:c_in, :c_out].set(w_r)
        wp = wp.at[:c_in, cpo:cpo + c_out].set(w_i)
        wp = wp.at[cpi:cpi + c_in, :c_out].set(-w_i)
        wp = wp.at[cpi:cpi + c_in, cpo:cpo + c_out].set(w_r)
        bp = jnp.zeros((1, 2 * cpo), jnp.float32)
        bp = bp.at[:, :c_out].set(b_r)
        bp = bp.at[:, cpo:cpo + c_out].set(b_i)
        packed.append((wp, bp, c_in, c_out, cpi, cpo))
    return packed


def mlp_forward(x_r, x_i, params, *, negative_slope=0.01, with_final_activation=True):
    """params: list of (w_r, w_i, b_r, b_i), one tuple per layer.

    Returns (y_r, y_i) float32 arrays of shape (N, out_channels).
    """
    num_layers = len(params)
    packed = _pack_params(params)

    n, c_in = x_r.shape
    cpi0 = packed[0][4]
    c_out_last = packed[-1][3]
    cpo_last = packed[-1][5]

    # Batch tiling: whole batch as one tile when small, 128-row tiles otherwise.
    tm = min(128, _round_up(n, 8))
    n_pad = _round_up(n, tm)

    # Pack input as [real | imag] with zero padding (padding is self-consistent:
    # padded columns/rows contribute nothing and stay zero through the layers).
    xp = jnp.zeros((n_pad, 2 * cpi0), jnp.float32)
    xp = xp.at[:n, :c_in].set(x_r)
    xp = xp.at[:n, cpi0:cpi0 + c_in].set(x_i)

    kernel = functools.partial(
        _mlp_fused_kernel,
        num_layers=num_layers,
        negative_slope=negative_slope,
        with_final_activation=with_final_activation,
    )

    in_specs = [pl.BlockSpec((tm, 2 * cpi0), lambda i: (i, 0))]
    operands = [xp]
    for (wp, bp, _ci, _co, _cpi, _cpo) in packed:
        # Weights / biases: full array, VMEM-resident across the whole grid.
        in_specs.append(pl.BlockSpec(wp.shape, lambda i: (0, 0)))
        in_specs.append(pl.BlockSpec(bp.shape, lambda i: (0, 0)))
        operands.append(wp)
        operands.append(bp)

    out = pl.pallas_call(
        kernel,
        grid=(n_pad // tm,),
        in_specs=in_specs,
        out_specs=pl.BlockSpec((tm, 2 * cpo_last), lambda i: (i, 0)),
        out_shape=jax.ShapeDtypeStruct((n_pad, 2 * cpo_last), jnp.float32),
        compiler_params=pltpu.CompilerParams(
            dimension_semantics=("parallel",)),
    )(*operands)

    y_r = out[:n, :c_out_last]
    y_i = out[:n, cpo_last:cpo_last + c_out_last]
    return y_r, y_i


def init_params(key, in_channels, hidden_channels, out_channels, num_layers):
    """Deterministic init matching PyTorch Linear shapes (uniform +-1/sqrt(fan_in)).

    Weights stored as (C_in, C_out) = PyTorch (out,in) pre-transposed.
    """
    if hidden_channels == 0:
        hidden_channels = in_channels
    params = []
    for i in range(num_layers):
        c_in = in_channels if i == 0 else hidden_channels
        c_out = hidden_channels if i < num_layers - 1 else out_channels
        bound = 1.0 / (c_in ** 0.5)
        key, kwr, kwi, kbr, kbi = jax.random.split(key, 5)
        w_r = jax.random.uniform(kwr, (c_in, c_out), jnp.float32, -bound, bound)
        w_i = jax.random.uniform(kwi, (c_in, c_out), jnp.float32, -bound, bound)
        b_r = jax.random.uniform(kbr, (1, c_out), jnp.float32, -bound, bound)
        b_i = jax.random.uniform(kbi, (1, c_out), jnp.float32, -bound, bound)
        params.append((w_r, w_i, b_r, b_i))
    return params


def mlp_reference(x_r, x_i, params, *, negative_slope=0.01, with_final_activation=True):
    """Pure-JAX complex reference for a sanity check."""
    x = x_r + 1j * x_i
    num_layers = len(params)
    for i, (w_r, w_i, b_r, b_i) in enumerate(params):
        w = (w_r + 1j * w_i).astype(jnp.complex64)
        b = (b_r + 1j * b_i).astype(jnp.complex64)
        x = x @ w + b
        if (i < num_layers - 1) or with_final_activation:
            lrelu = lambda v: jnp.where(v >= 0, v, negative_slope * v)
            x = lrelu(x.real) + 1j * lrelu(x.imag)
    return x


if __name__ == "__main__":
    key = jax.random.PRNGKey(0)
    IN_C, HID_C, OUT_C, NUM_LAYERS = 32, 32, 16, 2

    k_x, k_p = jax.random.split(key)
    params = init_params(k_p, IN_C, HID_C, OUT_C, NUM_LAYERS)

    # Small case: single grid step (whole batch in one tile).
    kxr, kxi = jax.random.split(k_x)
    x_r = jax.random.normal(kxr, (8, IN_C), jnp.float32)
    x_i = jax.random.normal(kxi, (8, IN_C), jnp.float32)

    y_r, y_i = mlp_forward(x_r, x_i, params)
    jax.block_until_ready((y_r, y_i))
    y_ref = mlp_reference(x_r, x_i, params)
    assert jnp.allclose(y_r, y_ref.real, atol=1e-4, rtol=1e-4)
    assert jnp.allclose(y_i, y_ref.imag, atol=1e-4, rtol=1e-4)

    # Slightly larger case: exercises the batch grid (2 tiles of 128 rows) and
    # row padding (136 -> 256).
    kxr2, kxi2 = jax.random.split(kxi)
    x_r2 = jax.random.normal(kxr2, (136, IN_C), jnp.float32)
    x_i2 = jax.random.normal(kxi2, (136, IN_C), jnp.float32)

    y_r2, y_i2 = mlp_forward(x_r2, x_i2, params)
    jax.block_until_ready((y_r2, y_i2))
    y_ref2 = mlp_reference(x_r2, x_i2, params)
    assert jnp.allclose(y_r2, y_ref2.real, atol=1e-4, rtol=1e-4)
    assert jnp.allclose(y_i2, y_ref2.imag, atol=1e-4, rtol=1e-4)

    print("KERNEL_OK")
</pallas_src>

<mosaic_0001>
module attributes {stable_mosaic.version = 11 : i64} {
  func.func @_mlp_fused_kernel(%arg0: i32, %arg1: memref<8x256xf32, #tpu.memory_space<vmem>>, %arg2: memref<256x256xf32, #tpu.memory_space<vmem>>, %arg3: memref<1x256xf32, #tpu.memory_space<vmem>>, %arg4: memref<256x256xf32, #tpu.memory_space<vmem>>, %arg5: memref<1x256xf32, #tpu.memory_space<vmem>>, %arg6: memref<8x256xf32, #tpu.memory_space<vmem>>) attributes {dimension_semantics = [#tpu.dimension_semantics<parallel>], iteration_bounds = array<i64: 1>, scalar_prefetch = 0 : i64, scratch_operands = 0 : i64, tpu.core_type = #tpu.core_type<tc>, window_params = [{transform_indices = @transform_0, window_bounds = array<i64: 8, 256>}, {pipeline_mode = #tpu.pipeline_mode<synchronous>, transform_indices = @transform_1, window_bounds = array<i64: 256, 256>}, {pipeline_mode = #tpu.pipeline_mode<synchronous>, transform_indices = @transform_2, window_bounds = array<i64: 1, 256>}, {pipeline_mode = #tpu.pipeline_mode<synchronous>, transform_indices = @transform_3, window_bounds = array<i64: 256, 256>}, {pipeline_mode = #tpu.pipeline_mode<synchronous>, transform_indices = @transform_4, window_bounds = array<i64: 1, 256>}, {transform_indices = @transform_5, window_bounds = array<i64: 8, 256>}]} {
    %c0 = arith.constant 0 : index
    %c0_0 = arith.constant 0 : index
    %0 = vector.load %arg1[%c0, %c0_0] : memref<8x256xf32, #tpu.memory_space<vmem>>, vector<8x256xf32>
    %c0_1 = arith.constant 0 : index
    %c0_2 = arith.constant 0 : index
    %1 = vector.load %arg2[%c0_1, %c0_2] : memref<256x256xf32, #tpu.memory_space<vmem>>, vector<256x256xf32>
    %c0_3 = arith.constant 0 : index
    %c0_4 = arith.constant 0 : index
    %2 = vector.load %arg3[%c0_3, %c0_4] : memref<1x256xf32, #tpu.memory_space<vmem>>, vector<1x256xf32>
    %cst = arith.constant dense<0.000000e+00> : vector<8x256xf32>
    %3 = tpu.matmul %0, %1, %cst {dimension_numbers = #tpu.dot_dimension_numbers<[1], [0], [0], [1], [0, 0, 1, 1], [], []>} : vector<8x256xf32>, vector<256x256xf32>, vector<8x256xf32> -> vector<8x256xf32>
    %4 = vector.broadcast %2 : vector<1x256xf32> to vector<8x256xf32>
    %5 = arith.addf %3, %4 : vector<8x256xf32>
    %cst_5 = arith.constant 0.000000e+00 : f32
    %6 = vector.broadcast %cst_5 : f32 to vector<8x256xf32>
    %7 = arith.cmpf oge, %5, %6 : vector<8x256xf32>
    %cst_6 = arith.constant 0.00999999977 : f32
    %8 = vector.broadcast %cst_6 : f32 to vector<8x256xf32>
    %9 = arith.mulf %8, %5 : vector<8x256xf32>
    %10 = arith.select %7, %5, %9 : vector<8x256xi1>, vector<8x256xf32>
    %c0_7 = arith.constant 0 : index
    %c0_8 = arith.constant 0 : index
    %11 = vector.load %arg4[%c0_7, %c0_8] : memref<256x256xf32, #tpu.memory_space<vmem>>, vector<256x256xf32>
    %c0_9 = arith.constant 0 : index
    %c0_10 = arith.constant 0 : index
    %12 = vector.load %arg5[%c0_9, %c0_10] : memref<1x256xf32, #tpu.memory_space<vmem>>, vector<1x256xf32>
    %cst_11 = arith.constant dense<0.000000e+00> : vector<8x256xf32>
    %13 = tpu.matmul %10, %11, %cst_11 {dimension_numbers = #tpu.dot_dimension_numbers<[1], [0], [0], [1], [0, 0, 1, 1], [], []>} : vector<8x256xf32>, vector<256x256xf32>, vector<8x256xf32> -> vector<8x256xf32>
    %14 = vector.broadcast %12 : vector<1x256xf32> to vector<8x256xf32>
    %15 = arith.addf %13, %14 : vector<8x256xf32>
    %cst_12 = arith.constant 0.000000e+00 : f32
    %16 = vector.broadcast %cst_12 : f32 to vector<8x256xf32>
    %17 = arith.cmpf oge, %15, %16 : vector<8x256xf32>
    %cst_13 = arith.constant 0.00999999977 : f32
    %18 = vector.broadcast %cst_13 : f32 to vector<8x256xf32>
    %19 = arith.mulf %18, %15 : vector<8x256xf32>
    %20 = arith.select %17, %15, %19 : vector<8x256xi1>, vector<8x256xf32>
    %c0_14 = arith.constant 0 : index
    %c0_15 = arith.constant 0 : index
    %21 = vector.load %arg6[%c0_14, %c0_15] : memref<8x256xf32, #tpu.memory_space<vmem>>, vector<8x256xf32>
    tpu.vector_store %arg6[%c0_14, %c0_15], %20 {strides = array<i32>} : memref<8x256xf32, #tpu.memory_space<vmem>>, vector<8x256xf32>,
    return
  }
  func.func @transform_0(%arg0: i32) -> (i32, i32) {
    %c0_i32 = arith.constant 0 : i32
    %c0_i32_0 = arith.constant 0 : i32
    return %arg0, %c0_i32 : i32, i32
  }
  func.func @transform_1(%arg0: i32) -> (i32, i32) {
    %c0_i32 = arith.constant 0 : i32
    %c0_i32_0 = arith.constant 0 : i32
    %c0_i32_1 = arith.constant 0 : i32
    return %c0_i32, %c0_i32_0 : i32, i32
  }
  func.func @transform_2(%arg0: i32) -> (i32, i32) {
    %c0_i32 = arith.constant 0 : i32
    %c0_i32_0 = arith.constant 0 : i32
    %c0_i32_1 = arith.constant 0 : i32
    return %c0_i32, %c0_i32_0 : i32, i32
  }
  func.func @transform_3(%arg0: i32) -> (i32, i32) {
    %c0_i32 = arith.constant 0 : i32
    %c0_i32_0 = arith.constant 0 : i32
    %c0_i32_1 = arith.constant 0 : i32
    return %c0_i32, %c0_i32_0 : i32, i32
  }
  func.func @transform_4(%arg0: i32) -> (i32, i32) {
    %c0_i32 = arith.constant 0 : i32
    %c0_i32_0 = arith.constant 0 : i32
    %c0_i32_1 = arith.constant 0 : i32
    return %c0_i32, %c0_i32_0 : i32, i32
  }
  func.func @transform_5(%arg0: i32) -> (i32, i32) {
    %c0_i32 = arith.constant 0 : i32
    %c0_i32_0 = arith.constant 0 : i32
    return %arg0, %c0_i32 : i32, i32
  }
}

</mosaic_0001>

<llo_original>
// kernel: tpu_custom_call.1
$region0: #{tpu_custom_call.1}
  #allocation0 [shape = 'u32[]', space=smem, size = 0x4, offset = 0x4, fixed_abs, tag = 'smem constant byte address 0x4 - core index']
  #allocation1 [shape = 'u32[72,128]{1,0:T(1,128)}', space=vmem, size = 0x9000, scoped, tag = 'internal scratch']
  %s0 = inlined_call_operand.hbm [shape: f32[8,256], index: 0, kind: input, shape index: {}]
  %s1 = inlined_call_operand.hbm [shape: f32[256,256], index: 1, kind: input, shape index: {}]
  %s2 = inlined_call_operand.hbm [shape: f32[1,256], index: 2, kind: input, shape index: {}]
  %s3 = inlined_call_operand.hbm [shape: f32[256,256], index: 3, kind: input, shape index: {}]
  %s4 = inlined_call_operand.vmem [shape: f32[1,256], index: 4, kind: input, shape index: {}]
  %s5 = inlined_call_operand.hbm [shape: f32[8,256], index: 5, kind: output, shape index: {}]
  %s6 = sld [smem:[#allocation0]]
  $region46: #{tpu_custom_call.1} parent=0
    _
  %s8 = ssub.s32 1, %s6
  %s9 = scalar_select 0, %s8, %s6
  $region1: #{tpu_custom_call.1} parent=0
    #allocation2 [shape = 'u8[8192]{0}', space=vmem, size = 0x2000, scoped, tag = 'input window, operand 0, single buffered']
    #allocation3 [shape = 's32[1]{0}', space=sflag, size = 0x4, scoped, tag = 'scoped memory for tpu_custom_call.1']
    #allocation4 [shape = 's32[1]{0}', space=sflag, size = 0x4, scoped, tag = 'scoped memory for tpu_custom_call.1']
    #allocation5 [shape = 'u8[262144]{0}', space=vmem, size = 0x40000, scoped, tag = 'input window, operand 1, single buffered']
    #allocation6 [shape = 's32[1]{0}', space=sflag, size = 0x4, scoped, tag = 'scoped memory for tpu_custom_call.1']
    #allocation7 [shape = 'u8[1024]{0}', space=vmem, size = 0x400, scoped, tag = 'input window, operand 2, single buffered']
    #allocation8 [shape = 'u8[262144]{0}', space=vmem, size = 0x40000, scoped, tag = 'input window, operand 3, single buffered']
    #allocation9 [shape = 's32[1]{0}', space=sflag, size = 0x4, scoped, tag = 'scoped memory for tpu_custom_call.1']
    #allocation10 [shape = 'u8[8192]{0}', space=vmem, size = 0x2000, scoped, tag = 'output window, operand 0, single buffered']
    %10 = vsyncpa [#allocation3], 0
    %11 = vsyncpa [#allocation6], 0
    %12 = vsyncpa [#allocation9], 0
    %13 = vsyncpa [#allocation4], 0
    // Predicated region
    $region2: #{tpu_custom_call.1} parent=1 // pred_check
      _
    $region3: #{tpu_custom_call.1} parent=1 // pred_check_branch
      %15 = sbr.rel (0) target = $region5
    $region4: #{tpu_custom_call.1} parent=1 // pred_region
      %17 = vsyncadd [#allocation3], 0
      %s19 = sshll.u32 %s0, 4
      %s20 = int_to_ptr.hbm [resolvable:$true] %s19
      %s21 = sshll.u32 [#allocation2], 4
      %s22 = int_to_ptr.vmem [resolvable:$true] %s21
      %24 = dma.hbm_to_vmem [thread:$0]  %s20, 256, %s22, [#allocation3]
    $region5: #{tpu_custom_call.1} parent=1 // pred_fallthru
      _
    // Predicated region
    $region6: #{tpu_custom_call.1} parent=1 // pred_check
      _
    $region7: #{tpu_custom_call.1} parent=1 // pred_check_branch
      %26 = sbr.rel (0) target = $region9
    $region8: #{tpu_custom_call.1} parent=1 // pred_region
      %28 = vsyncadd [#allocation6], 0
      %s29 = sshll.u32 %s1, 4
      %s30 = int_to_ptr.hbm [resolvable:$true] %s29
      %s31 = sshll.u32 [#allocation5], 4
      %s32 = int_to_ptr.vmem [resolvable:$true] %s31
      %37 = dma.hbm_to_vmem [thread:$0]  %s30, 8192, %s32, [#allocation6], 256, 256, 16
    $region9: #{tpu_custom_call.1} parent=1 // pred_fallthru
      _
    // Predicated region
    $region10: #{tpu_custom_call.1} parent=1 // pred_check
      _
    $region11: #{tpu_custom_call.1} parent=1 // pred_check_branch
      %39 = sbr.rel (0) target = $region13
    $region12: #{tpu_custom_call.1} parent=1 // pred_region
      %41 = vsyncadd [#allocation6], 0
      %s43 = sshll.u32 %s2, 4
      %s44 = int_to_ptr.hbm [resolvable:$true] %s43
      %s45 = sshll.u32 [#allocation7], 4
      %s46 = int_to_ptr.vmem [resolvable:$true] %s45
      %48 = dma.hbm_to_vmem [thread:$0]  %s44, 32, %s46, [#allocation6]
    $region13: #{tpu_custom_call.1} parent=1 // pred_fallthru
      _
    // Predicated region
    $region14: #{tpu_custom_call.1} parent=1 // pred_check
      _
    $region15: #{tpu_custom_call.1} parent=1 // pred_check_branch
      %50 = sbr.rel (0) target = $region17
    $region16: #{tpu_custom_call.1} parent=1 // pred_region
      %52 = vsyncadd [#allocation9], 0
      %s53 = sshll.u32 %s3, 4
      %s54 = int_to_ptr.hbm [resolvable:$true] %s53
      %s55 = sshll.u32 [#allocation8], 4
      %s56 = int_to_ptr.vmem [resolvable:$true] %s55
      %61 = dma.hbm_to_vmem [thread:$0]  %s54, 8192, %s56, [#allocation9], 256, 256, 16
    $region17: #{tpu_custom_call.1} parent=1 // pred_fallthru
      _
    // Predicated region
    $region18: #{tpu_custom_call.1} parent=1 // pred_check
      _
    $region19: #{tpu_custom_call.1} parent=1 // pred_check_branch
      %63 = sbr.rel (0) target = $region21
    $region20: #{tpu_custom_call.1} parent=1 // pred_region
      _
    $region21: #{tpu_custom_call.1} parent=1 // pred_fallthru
      _
    // Predicated region
    $region22: #{tpu_custom_call.1} parent=1 // pred_check
      _
    $region23: #{tpu_custom_call.1} parent=1 // pred_check_branch
      %65 = sbr.rel (0) target = $region25
    $region24: #{tpu_custom_call.1} parent=1 // pred_region
      %67 = dma.done [#allocation3], 256
    $region25: #{tpu_custom_call.1} parent=1 // pred_fallthru
      _
    // Predicated region
    $region26: #{tpu_custom_call.1} parent=1 // pred_check
      _
    $region27: #{tpu_custom_call.1} parent=1 // pred_check_branch
      %69 = sbr.rel (0) target = $region29
    $region28: #{tpu_custom_call.1} parent=1 // pred_region
      %71 = dma.done [#allocation6], 8192
    $region29: #{tpu_custom_call.1} parent=1 // pred_fallthru
      _
    // Predicated region
    $region30: #{tpu_custom_call.1} parent=1 // pred_check
      _
    $region31: #{tpu_custom_call.1} parent=1 // pred_check_branch
      %73 = sbr.rel (0) target = $region33
    $region32: #{tpu_custom_call.1} parent=1 // pred_region
      %75 = dma.done [#allocation6], 32
    $region33: #{tpu_custom_call.1} parent=1 // pred_fallthru
      _
    // Predicated region
    $region34: #{tpu_custom_call.1} parent=1 // pred_check
      _
    $region35: #{tpu_custom_call.1} parent=1 // pred_check_branch
      %77 = sbr.rel (0) target = $region37
    $region36: #{tpu_custom_call.1} parent=1 // pred_region
      %79 = dma.done [#allocation9], 8192
    $region37: #{tpu_custom_call.1} parent=1 // pred_fallthru
      _
    %v80 = vld [vmem:[#allocation2] sm:$0xff]
    %v81 = vld [vmem:[#allocation2 + $0x8] sm:$0xff]
    %v82 = vld [vmem:[#allocation5] sm:$0xff]
    %v83 = vld [vmem:[#allocation5 + $0x8] sm:$0xff]
    %v84 = vld [vmem:[#allocation5 + $0x10] sm:$0xff]
    %v85 = vld [vmem:[#allocation5 + $0x18] sm:$0xff]
    %v86 = vld [vmem:[#allocation5 + $0x20] sm:$0xff]
    %v87 = vld [vmem:[#allocation5 + $0x28] sm:$0xff]
    %v88 = vld [vmem:[#allocation5 + $0x30] sm:$0xff]
    %v89 = vld [vmem:[#allocation5 + $0x38] sm:$0xff]
    %v90 = vld [vmem:[#allocation5 + $0x40] sm:$0xff]
    %v91 = vld [vmem:[#allocation5 + $0x48] sm:$0xff]
    %v92 = vld [vmem:[#allocation5 + $0x50] sm:$0xff]
    %v93 = vld [vmem:[#allocation5 + $0x58] sm:$0xff]
    %v94 = vld [vmem:[#allocation5 + $0x60] sm:$0xff]
    %v95 = vld [vmem:[#allocation5 + $0x68] sm:$0xff]
    %v96 = vld [vmem:[#allocation5 + $0x70] sm:$0xff]
    %v97 = vld [vmem:[#allocation5 + $0x78] sm:$0xff]
    %v98 = vld [vmem:[#allocation5 + $0x80] sm:$0xff]
    %v99 = vld [vmem:[#allocation5 + $0x88] sm:$0xff]
    %v100 = vld [vmem:[#allocation5 + $0x90] sm:$0xff]
    %v101 = vld [vmem:[#allocation5 + $0x98] sm:$0xff]
    %v102 = vld [vmem:[#allocation5 + $0xa0] sm:$0xff]
    %v103 = vld [vmem:[#allocation5 + $0xa8] sm:$0xff]
    %v104 = vld [vmem:[#allocation5 + $0xb0] sm:$0xff]
    %v105 = vld [vmem:[#allocation5 + $0xb8] sm:$0xff]
    %v106 = vld [vmem:[#allocation5 + $0xc0] sm:$0xff]
    %v107 = vld [vmem:[#allocation5 + $0xc8] sm:$0xff]
    %v108 = vld [vmem:[#allocation5 + $0xd0] sm:$0xff]
    %v109 = vld [vmem:[#allocation5 + $0xd8] sm:$0xff]
    %v110 = vld [vmem:[#allocation5 + $0xe0] sm:$0xff]
    %v111 = vld [vmem:[#allocation5 + $0xe8] sm:$0xff]
    %v112 = vld [vmem:[#allocation5 + $0xf0] sm:$0xff]
    %v113 = vld [vmem:[#allocation5 + $0xf8] sm:$0xff]
    %v114 = vld [vmem:[#allocation5 + $0x100] sm:$0xff]
    %v115 = vld [vmem:[#allocation5 + $0x108] sm:$0xff]
    %v116 = vld [vmem:[#allocation5 + $0x110] sm:$0xff]
    %v117 = vld [vmem:[#allocation5 + $0x118] sm:$0xff]
    %v118 = vld [vmem:[#allocation5 + $0x120] sm:$0xff]
    %v119 = vld [vmem:[#allocation5 + $0x128] sm:$0xff]
    %v120 = vld [vmem:[#allocation5 + $0x130] sm:$0xff]
    %v121 = vld [vmem:[#allocation5 + $0x138] sm:$0xff]
    %v122 = vld [vmem:[#allocation5 + $0x140] sm:$0xff]
    %v123 = vld [vmem:[#allocation5 + $0x148] sm:$0xff]
    %v124 = vld [vmem:[#allocation5 + $0x150] sm:$0xff]
    %v125 = vld [vmem:[#allocation5 + $0x158] sm:$0xff]
    %v126 = vld [vmem:[#allocation5 + $0x160] sm:$0xff]
    %v127 = vld [vmem:[#allocation5 + $0x168] sm:$0xff]
    %v128 = vld [vmem:[#allocation5 + $0x170] sm:$0xff]
    %v129 = vld [vmem:[#allocation5 + $0x178] sm:$0xff]
    %v130 = vld [vmem:[#allocation5 + $0x180] sm:$0xff]
    %v131 = vld [vmem:[#allocation5 + $0x188] sm:$0xff]
    %v132 = vld [vmem:[#allocation5 + $0x190] sm:$0xff]
    %v133 = vld [vmem:[#allocation5 + $0x198] sm:$0xff]
    %v134 = vld [vmem:[#allocation5 + $0x1a0] sm:$0xff]
    %v135 = vld [vmem:[#allocation5 + $0x1a8] sm:$0xff]
    %v136 = vld [vmem:[#allocation5 + $0x1b0] sm:$0xff]
    %v137 = vld [vmem:[#allocation5 + $0x1b8] sm:$0xff]
    %v138 = vld [vmem:[#allocation5 + $0x1c0] sm:$0xff]
    %v139 = vld [vmem:[#allocation5 + $0x1c8] sm:$0xff]
    %v140 = vld [vmem:[#allocation5 + $0x1d0] sm:$0xff]
    %v141 = vld [vmem:[#allocation5 + $0x1d8] sm:$0xff]
    %v142 = vld [vmem:[#allocation5 + $0x1e0] sm:$0xff]
    %v143 = vld [vmem:[#allocation5 + $0x1e8] sm:$0xff]
    %v144 = vld [vmem:[#allocation5 + $0x1f0] sm:$0xff]
    %v145 = vld [vmem:[#allocation5 + $0x1f8] sm:$0xff]
    %v146 = vld [vmem:[#allocation7] sm:$0x3]
    %v148 = vperm.slane %v146, 0
    %v149 = vperm.slane %v146, 1
    %152 = vmatpush.msra.mxu0 %v112
    %153 = vmatpush.msra.mxu0 %v110
    %154 = vmatpush.msra.mxu0 %v108
    %155 = vmatpush.msra.mxu0 %v106
    %156 = vmatpush.msra.mxu0 %v104
    %157 = vmatpush.msra.mxu0 %v102
    %158 = vmatpush.msra.mxu0 %v100
    %159 = vmatpush.msra.mxu0 %v98
    %160 = vmatpush.msra.mxu0 %v96
    %161 = vmatpush.msra.mxu0 %v94
    %162 = vmatpush.msra.mxu0 %v92
    %163 = vmatpush.msra.mxu0 %v90
    %164 = vmatpush.msra.mxu0 %v88
    %165 = vmatpush.msra.mxu0 %v86
    %166 = vmatpush.msra.mxu0 %v84
    %167 = vmatpush.msra.mxu0 %v82
    %168 = vmatmul.f32.gmra.mxu0 %v80
    %v169 = vpop.f32.mrf.mxu0
    %v170 = vadd.f32 %v148, %v169
    %171 = vdwg.mxu0
    %172 = vmatpush.msra.mxu0 %v144
    %173 = vmatpush.msra.mxu0 %v142
    %174 = vmatpush.msra.mxu0 %v140
    %175 = vmatpush.msra.mxu0 %v138
    %176 = vmatpush.msra.mxu0 %v136
    %177 = vmatpush.msra.mxu0 %v134
    %178 = vmatpush.msra.mxu0 %v132
    %179 = vmatpush.msra.mxu0 %v130
    %180 = vmatpush.msra.mxu0 %v128
    %181 = vmatpush.msra.mxu0 %v126
    %182 = vmatpush.msra.mxu0 %v124
    %183 = vmatpush.msra.mxu0 %v122
    %184 = vmatpush.msra.mxu0 %v120
    %185 = vmatpush.msra.mxu0 %v118
    %186 = vmatpush.msra.mxu0 %v116
    %187 = vmatpush.msra.mxu0 %v114
    %188 = vmatmul.f32.gmra.mxu0 %v81
    %v189 = vpop.f32.mrf.mxu0
    %v190 = vadd.f32 %v170, %v189
    %191 = vdwg.mxu0
    %192 = vmatpush.msra.mxu0 %v113
    %193 = vmatpush.msra.mxu0 %v111
    %194 = vmatpush.msra.mxu0 %v109
    %195 = vmatpush.msra.mxu0 %v107
    %196 = vmatpush.msra.mxu0 %v105
    %197 = vmatpush.msra.mxu0 %v103
    %198 = vmatpush.msra.mxu0 %v101
    %199 = vmatpush.msra.mxu0 %v99
    %200 = vmatpush.msra.mxu0 %v97
    %201 = vmatpush.msra.mxu0 %v95
    %202 = vmatpush.msra.mxu0 %v93
    %203 = vmatpush.msra.mxu0 %v91
    %204 = vmatpush.msra.mxu0 %v89
    %205 = vmatpush.msra.mxu0 %v87
    %206 = vmatpush.msra.mxu0 %v85
    %207 = vmatpush.msra.mxu0 %v83
    %208 = vmatmul.f32.gmra.mxu0 %v80
    %v209 = vpop.f32.mrf.mxu0
    %v210 = vadd.f32 %v149, %v209
    %211 = vdwg.mxu0
    %212 = vmatpush.msra.mxu0 %v145
    %213 = vmatpush.msra.mxu0 %v143
    %214 = vmatpush.msra.mxu0 %v141
    %215 = vmatpush.msra.mxu0 %v139
    %216 = vmatpush.msra.mxu0 %v137
    %217 = vmatpush.msra.mxu0 %v135
    %218 = vmatpush.msra.mxu0 %v133
    %219 = vmatpush.msra.mxu0 %v131
    %220 = vmatpush.msra.mxu0 %v129
    %221 = vmatpush.msra.mxu0 %v127
    %222 = vmatpush.msra.mxu0 %v125
    %223 = vmatpush.msra.mxu0 %v123
    %224 = vmatpush.msra.mxu0 %v121
    %225 = vmatpush.msra.mxu0 %v119
    %226 = vmatpush.msra.mxu0 %v117
    %227 = vmatpush.msra.mxu0 %v115
    %228 = vmatmul.f32.gmra.mxu0 %v81
    %v229 = vpop.f32.mrf.mxu0
    %v230 = vadd.f32 %v210, %v229
    %231 = vdwg.mxu0
    %vm232 = vcmp.ge.f32.partialorder %v190, 0.0
    %vm233 = vcmp.ge.f32.partialorder %v230, 0.0
    %v234 = vmul.f32 %v190, 0.01
    %v235 = vmul.f32 %v230, 0.01
    %v236 = vsel %vm232, %v190, %v234
    %v237 = vsel %vm233, %v230, %v235
    %v238 = vld [vmem:[#allocation8] sm:$0xff]
    %v239 = vld [vmem:[#allocation8 + $0x8] sm:$0xff]
    %v240 = vld [vmem:[#allocation8 + $0x10] sm:$0xff]
    %v241 = vld [vmem:[#allocation8 + $0x18] sm:$0xff]
    %v242 = vld [vmem:[#allocation8 + $0x20] sm:$0xff]
    %v243 = vld [vmem:[#allocation8 + $0x28] sm:$0xff]
    %v244 = vld [vmem:[#allocation8 + $0x30] sm:$0xff]
    %v245 = vld [vmem:[#allocation8 + $0x38] sm:$0xff]
    %v246 = vld [vmem:[#allocation8 + $0x40] sm:$0xff]
    %v247 = vld [vmem:[#allocation8 + $0x48] sm:$0xff]
    %v248 = vld [vmem:[#allocation8 + $0x50] sm:$0xff]
    %v249 = vld [vmem:[#allocation8 + $0x58] sm:$0xff]
    %v250 = vld [vmem:[#allocation8 + $0x60] sm:$0xff]
    %v251 = vld [vmem:[#allocation8 + $0x68] sm:$0xff]
    %v252 = vld [vmem:[#allocation8 + $0x70] sm:$0xff]
    %v253 = vld [vmem:[#allocation8 + $0x78] sm:$0xff]
    %v254 = vld [vmem:[#allocation8 + $0x80] sm:$0xff]
    %v255 = vld [vmem:[#allocation8 + $0x88] sm:$0xff]
    %v256 = vld [vmem:[#allocation8 + $0x90] sm:$0xff]
    %v257 = vld [vmem:[#allocation8 + $0x98] sm:$0xff]
    %v258 = vld [vmem:[#allocation8 + $0xa0] sm:$0xff]
    %v259 = vld [vmem:[#allocation8 + $0xa8] sm:$0xff]
    %v260 = vld [vmem:[#allocation8 + $0xb0] sm:$0xff]
    %v261 = vld [vmem:[#allocation8 + $0xb8] sm:$0xff]
    %v262 = vld [vmem:[#allocation8 + $0xc0] sm:$0xff]
    %v263 = vld [vmem:[#allocation8 + $0xc8] sm:$0xff]
    %v264 = vld [vmem:[#allocation8 + $0xd0] sm:$0xff]
    %v265 = vld [vmem:[#allocation8 + $0xd8] sm:$0xff]
    %v266 = vld [vmem:[#allocation8 + $0xe0] sm:$0xff]
    %v267 = vld [vmem:[#allocation8 + $0xe8] sm:$0xff]
    %v268 = vld [vmem:[#allocation8 + $0xf0] sm:$0xff]
    %v269 = vld [vmem:[#allocation8 + $0xf8] sm:$0xff]
    %v270 = vld [vmem:[#allocation8 + $0x100] sm:$0xff]
    %v271 = vld [vmem:[#allocation8 + $0x108] sm:$0xff]
    %v272 = vld [vmem:[#allocation8 + $0x110] sm:$0xff]
    %v273 = vld [vmem:[#allocation8 + $0x118] sm:$0xff]
    %v274 = vld [vmem:[#allocation8 + $0x120] sm:$0xff]
    %v275 = vld [vmem:[#allocation8 + $0x128] sm:$0xff]
    %v276 = vld [vmem:[#allocation8 + $0x130] sm:$0xff]
    %v277 = vld [vmem:[#allocation8 + $0x138] sm:$0xff]
    %v278 = vld [vmem:[#allocation8 + $0x140] sm:$0xff]
    %v279 = vld [vmem:[#allocation8 + $0x148] sm:$0xff]
    %v280 = vld [vmem:[#allocation8 + $0x150] sm:$0xff]
    %v281 = vld [vmem:[#allocation8 + $0x158] sm:$0xff]
    %v282 = vld [vmem:[#allocation8 + $0x160] sm:$0xff]
    %v283 = vld [vmem:[#allocation8 + $0x168] sm:$0xff]
    %v284 = vld [vmem:[#allocation8 + $0x170] sm:$0xff]
    %v285 = vld [vmem:[#allocation8 + $0x178] sm:$0xff]
    %v286 = vld [vmem:[#allocation8 + $0x180] sm:$0xff]
    %v287 = vld [vmem:[#allocation8 + $0x188] sm:$0xff]
    %v288 = vld [vmem:[#allocation8 + $0x190] sm:$0xff]
    %v289 = vld [vmem:[#allocation8 + $0x198] sm:$0xff]
    %v290 = vld [vmem:[#allocation8 + $0x1a0] sm:$0xff]
    %v291 = vld [vmem:[#allocation8 + $0x1a8] sm:$0xff]
    %v292 = vld [vmem:[#allocation8 + $0x1b0] sm:$0xff]
    %v293 = vld [vmem:[#allocation8 + $0x1b8] sm:$0xff]
    %v294 = vld [vmem:[#allocation8 + $0x1c0] sm:$0xff]
    %v295 = vld [vmem:[#allocation8 + $0x1c8] sm:$0xff]
    %v296 = vld [vmem:[#allocation8 + $0x1d0] sm:$0xff]
    %v297 = vld [vmem:[#allocation8 + $0x1d8] sm:$0xff]
    %v298 = vld [vmem:[#allocation8 + $0x1e0] sm:$0xff]
    %v299 = vld [vmem:[#allocation8 + $0x1e8] sm:$0xff]
    %v300 = vld [vmem:[#allocation8 + $0x1f0] sm:$0xff]
    %v301 = vld [vmem:[#allocation8 + $0x1f8] sm:$0xff]
    %v302 = vld [vmem:[%s4] sm:$0x3]
    %v304 = vperm.slane %v302, 0
    %v305 = vperm.slane %v302, 1
    %308 = vmatpush.msra.mxu0 %v268
    %309 = vmatpush.msra.mxu0 %v266
    %310 = vmatpush.msra.mxu0 %v264
    %311 = vmatpush.msra.mxu0 %v262
    %312 = vmatpush.msra.mxu0 %v260
    %313 = vmatpush.msra.mxu0 %v258
    %314 = vmatpush.msra.mxu0 %v256
    %315 = vmatpush.msra.mxu0 %v254
    %316 = vmatpush.msra.mxu0 %v252
    %317 = vmatpush.msra.mxu0 %v250
    %318 = vmatpush.msra.mxu0 %v248
    %319 = vmatpush.msra.mxu0 %v246
    %320 = vmatpush.msra.mxu0 %v244
    %321 = vmatpush.msra.mxu0 %v242
    %322 = vmatpush.msra.mxu0 %v240
    %323 = vmatpush.msra.mxu0 %v238
    %324 = vmatmul.f32.gmra.mxu0 %v236
    %v325 = vpop.f32.mrf.mxu0
    %v326 = vadd.f32 %v304, %v325
    %327 = vdwg.mxu0
    %328 = vmatpush.msra.mxu0 %v300
    %329 = vmatpush.msra.mxu0 %v298
    %330 = vmatpush.msra.mxu0 %v296
    %331 = vmatpush.msra.mxu0 %v294
    %332 = vmatpush.msra.mxu0 %v292
    %333 = vmatpush.msra.mxu0 %v290
    %334 = vmatpush.msra.mxu0 %v288
    %335 = vmatpush.msra.mxu0 %v286
    %336 = vmatpush.msra.mxu0 %v284
    %337 = vmatpush.msra.mxu0 %v282
    %338 = vmatpush.msra.mxu0 %v280
    %339 = vmatpush.msra.mxu0 %v278
    %340 = vmatpush.msra.mxu0 %v276
    %341 = vmatpush.msra.mxu0 %v274
    %342 = vmatpush.msra.mxu0 %v272
    %343 = vmatpush.msra.mxu0 %v270
    %344 = vmatmul.f32.gmra.mxu0 %v237
    %v345 = vpop.f32.mrf.mxu0
    %v346 = vadd.f32 %v326, %v345
    %347 = vdwg.mxu0
    %348 = vmatpush.msra.mxu0 %v269
    %349 = vmatpush.msra.mxu0 %v267
    %350 = vmatpush.msra.mxu0 %v265
    %351 = vmatpush.msra.mxu0 %v263
    %352 = vmatpush.msra.mxu0 %v261
    %353 = vmatpush.msra.mxu0 %v259
    %354 = vmatpush.msra.mxu0 %v257
    %355 = vmatpush.msra.mxu0 %v255
    %356 = vmatpush.msra.mxu0 %v253
    %357 = vmatpush.msra.mxu0 %v251
    %358 = vmatpush.msra.mxu0 %v249
    %359 = vmatpush.msra.mxu0 %v247
    %360 = vmatpush.msra.mxu0 %v245
    %361 = vmatpush.msra.mxu0 %v243
    %362 = vmatpush.msra.mxu0 %v241
    %363 = vmatpush.msra.mxu0 %v239
    %364 = vmatmul.f32.gmra.mxu0 %v236
    %v365 = vpop.f32.mrf.mxu0
    %v366 = vadd.f32 %v305, %v365
    %367 = vdwg.mxu0
    %368 = vmatpush.msra.mxu0 %v301
    %369 = vmatpush.msra.mxu0 %v299
    %370 = vmatpush.msra.mxu0 %v297
    %371 = vmatpush.msra.mxu0 %v295
    %372 = vmatpush.msra.mxu0 %v293
    %373 = vmatpush.msra.mxu0 %v291
    %374 = vmatpush.msra.mxu0 %v289
    %375 = vmatpush.msra.mxu0 %v287
    %376 = vmatpush.msra.mxu0 %v285
    %377 = vmatpush.msra.mxu0 %v283
    %378 = vmatpush.msra.mxu0 %v281
    %379 = vmatpush.msra.mxu0 %v279
    %380 = vmatpush.msra.mxu0 %v277
    %381 = vmatpush.msra.mxu0 %v275
    %382 = vmatpush.msra.mxu0 %v273
    %383 = vmatpush.msra.mxu0 %v271
    %384 = vmatmul.f32.gmra.mxu0 %v237
    %v385 = vpop.f32.mrf.mxu0
    %v386 = vadd.f32 %v366, %v385
    %387 = vdwg.mxu0
    %vm388 = vcmp.ge.f32.partialorder %v346, 0.0
    %vm389 = vcmp.ge.f32.partialorder %v386, 0.0
    %v390 = vmul.f32 %v346, 0.01
    %v391 = vmul.f32 %v386, 0.01
    %v392 = vsel %vm388, %v346, %v390
    %v393 = vsel %vm389, %v386, %v391
    %394 = vst [vmem:[#allocation10] sm:$0xff] %v392
    %395 = vst [vmem:[#allocation10 + $0x8] sm:$0xff] %v393
    // Predicated region
    $region38: #{tpu_custom_call.1} parent=1 // pred_check
      _
    $region39: #{tpu_custom_call.1} parent=1 // pred_check_branch
      %397 = sbr.rel (0) target = $region41
    $region40: #{tpu_custom_call.1} parent=1 // pred_region
      %399 = vsyncadd [#allocation4], 0
      %s401 = sshll.u32 [#allocation10], 4
      %s402 = int_to_ptr.vmem [resolvable:$true] %s401
      %s403 = sshll.u32 %s5, 4
      %s404 = int_to_ptr.hbm [resolvable:$true] %s403
      %406 = dma.vmem_to_hbm [thread:$0]  %s402, 256, %s404, [#allocation4]
    $region41: #{tpu_custom_call.1} parent=1 // pred_fallthru
      _
    // Predicated region
    $region42: #{tpu_custom_call.1} parent=1 // pred_check
      _
    $region43: #{tpu_custom_call.1} parent=1 // pred_check_branch
      %408 = sbr.rel (0) target = $region45
    $region44: #{tpu_custom_call.1} parent=1 // pred_region
      %410 = dma.done [#allocation4], 256
    $region45: #{tpu_custom_call.1} parent=1 // pred_fallthru
      _
    %411 = vsyncpa [#allocation3], 1
    %412 = vsyncpa [#allocation6], 1
    %413 = vsyncpa [#allocation9], 1
    %414 = vsyncpa [#allocation4], 1

</llo_original>
